<compile_context>
chip_gen: v6e
topology: v6e:2x2x1
jax: 0.10.0
libtpu: 0.0.40
codegen_flags: <defaults>
</compile_context>

<pallas_src>
import jax
import jax.numpy as jnp
from jax import lax
from jax.experimental import pallas as pl
from jax.experimental.pallas import tpu as pltpu


# --------------------------------------------------------------------------
# Helpers
# --------------------------------------------------------------------------
def _apply_act(h, act):
    if act == "relu":
        return jnp.maximum(h, 0.0)
    if act == "leaky":                       # LeakyReLU(0.1)
        return jnp.where(h > 0, h, 0.1 * h)
    return h


def _choose_row_tile(M, cap=512):
    """Largest 8-multiple tile that divides M and gives >1 grid step; else M."""
    for t in (512, 256, 128, 64, 32, 16, 8):
        if t <= cap and t < M and M % t == 0:
            return t
    if M > cap:
        return 256          # caller pads rows up to a multiple of this
    return M                 # single full-extent block (always legal)


def _choose_group_tile(G):
    for t in (64, 32, 16, 8):
        if t < G and G % t == 0:
            return t
    return G


# --------------------------------------------------------------------------
# Pallas kernels
# --------------------------------------------------------------------------
def pointwise_mlp(x, layers):
    """Fused chain of (1x1 conv / linear) @ W + bias + act (BN pre-folded into W).

    x: (M, C_in) f32.  layers: list of {w:(Cin,Cout), bias:(1,Cout), act:str}.
    Returns (M, C_out_last) f32.  Rows are tiled with a "parallel" grid axis.
    """
    M, Cin = x.shape
    Cout = layers[-1]["w"].shape[1]
    acts = tuple(l["act"] for l in layers)
    n_layers = len(layers)

    TM = _choose_row_tile(M)
    Mp = -(-M // TM) * TM
    if Mp != M:                               # pad ragged row counts (no assert)
        x = jnp.pad(x, ((0, Mp - M), (0, 0)))

    def kernel(x_ref, *refs):
        o_ref = refs[-1]
        h = x_ref[...]
        for li in range(n_layers):
            w = refs[2 * li][...]
            b = refs[2 * li + 1][...]
            h = jnp.dot(h, w, preferred_element_type=jnp.float32) + b
            h = _apply_act(h, acts[li])
        o_ref[...] = h

    in_specs = [pl.BlockSpec((TM, Cin), lambda i: (i, 0))]
    args = [x]
    for l in layers:
        for name in ("w", "bias"):
            a = l[name]
            in_specs.append(pl.BlockSpec(a.shape, lambda i: (0, 0)))
            args.append(a)

    out = pl.pallas_call(
        kernel,
        grid=(Mp // TM,),
        in_specs=in_specs,
        out_specs=pl.BlockSpec((TM, Cout), lambda i: (i, 0)),
        out_shape=jax.ShapeDtypeStruct((Mp, Cout), jnp.float32),
        compiler_params=pltpu.CompilerParams(dimension_semantics=("parallel",)),
    )(*args)
    return out[:M] if Mp != M else out


def grouped_mlp_max(x_flat, G, K, layers):
    """SharedMLP(dim=2) over grouped neighbors fused with max-over-K reduction.

    x_flat: (G*K, Cin) f32 flattened groups (G = batch*centers), already
    points-major so no in-kernel input reshape is needed.
    Returns (G, C_out_last) f32.
    """
    GK, Cin = x_flat.shape
    assert GK == G * K
    Cout = layers[-1]["w"].shape[1]
    acts = tuple(l["act"] for l in layers)
    n_layers = len(layers)

    TG = _choose_group_tile(G)               # keeps tile VMEM-safe at scale too

    def kernel(x_ref, *refs):
        o_ref = refs[-1]
        h = x_ref[...]                       # (TG*K, Cin)
        for li in range(n_layers):
            w = refs[2 * li][...]
            b = refs[2 * li + 1][...]
            h = jnp.dot(h, w, preferred_element_type=jnp.float32) + b
            h = _apply_act(h, acts[li])
        h = h.reshape(TG, K, Cout)
        o_ref[...] = jnp.max(h, axis=1)

    in_specs = [pl.BlockSpec((TG * K, Cin), lambda i: (i, 0))]
    args = [x_flat]
    for l in layers:
        for name in ("w", "bias"):
            a = l[name]
            in_specs.append(pl.BlockSpec(a.shape, lambda i: (0, 0)))
            args.append(a)

    return pl.pallas_call(
        kernel,
        grid=(G // TG,),
        in_specs=in_specs,
        out_specs=pl.BlockSpec((TG, Cout), lambda i: (i, 0)),
        out_shape=jax.ShapeDtypeStruct((G, Cout), jnp.float32),
        compiler_params=pltpu.CompilerParams(dimension_semantics=("parallel",)),
    )(*args)


def attention(x, p):
    """Global self-attention over points, points-major: fused QKV projection,
    softmax (EUP reciprocal), output projection, residual add.
    x: (B, M, C) f32."""
    # TODO(synk): exact Attention(channels, dim=1) source was not provided;
    # standard residual QKV attention is implemented here.
    # TODO(synk): for production N, tile over keys (flash-style online softmax)
    # instead of the full (M, M) score tile.
    B, M, C = x.shape
    scale = float(C) ** -0.5
    w_qkv, b_qkv, wo, bo = p["w_qkv"], p["b_qkv"], p["wo"], p["bo"]

    def kernel(x_ref, wqkv_ref, bqkv_ref, wo_ref, bo_ref, o_ref):
        xb = x_ref[0]                                             # (M, C)
        qkv = jnp.dot(xb, wqkv_ref[...],
                      preferred_element_type=jnp.float32) + bqkv_ref[...]
        q = qkv[:, :C]
        k = qkv[:, C:2 * C]
        v = qkv[:, 2 * C:]
        s = jnp.dot(q, k.T, preferred_element_type=jnp.float32) * scale
        s = s - jnp.max(s, axis=-1, keepdims=True)
        e = jnp.exp(s)
        w = e * pl.reciprocal(jnp.sum(e, axis=-1, keepdims=True), approx=True)
        h = jnp.dot(w, v, preferred_element_type=jnp.float32)
        h = jnp.dot(h, wo_ref[...], preferred_element_type=jnp.float32) + bo_ref[...]
        o_ref[0] = xb + h

    in_specs = [pl.BlockSpec((1, M, C), lambda b: (b, 0, 0)),
                pl.BlockSpec(w_qkv.shape, lambda b: (0, 0)),
                pl.BlockSpec(b_qkv.shape, lambda b: (0, 0)),
                pl.BlockSpec(wo.shape, lambda b: (0, 0)),
                pl.BlockSpec(bo.shape, lambda b: (0, 0))]

    return pl.pallas_call(
        kernel,
        grid=(B,),
        in_specs=in_specs,
        out_specs=pl.BlockSpec((1, M, C), lambda b: (b, 0, 0)),
        out_shape=jax.ShapeDtypeStruct((B, M, C), jnp.float32),
        compiler_params=pltpu.CompilerParams(dimension_semantics=("parallel",)),
    )(x, w_qkv, b_qkv, wo, bo)


# --------------------------------------------------------------------------
# Point-cloud glue ops (data-dependent indexing) in plain JAX, points-major
# --------------------------------------------------------------------------
def furthest_point_sample(coords, num_centers):
    """coords (B,N,3) -> centers (B,num_centers,3); starts at point 0 (CUDA FPS)."""
    N = coords.shape[1]

    def one(p):
        def body(i, state):
            idxs, dists = state
            last = p[idxs[i - 1]]
            d = jnp.sum((p - last) ** 2, axis=-1)
            dists = jnp.minimum(dists, d)
            idxs = idxs.at[i].set(jnp.argmax(dists).astype(jnp.int32))
            return idxs, dists

        idxs0 = jnp.zeros((num_centers,), jnp.int32)
        dists0 = jnp.full((N,), 1e10, jnp.float32)
        idxs, _ = lax.fori_loop(1, num_centers, body, (idxs0, dists0))
        return idxs

    idxs = jax.vmap(one)(coords)                            # (B, M)
    centers = jax.vmap(lambda p, i: p[i])(coords, idxs)     # (B, M, 3)
    return centers


def ball_query(centers, coords, radius, K):
    """First K neighbors within radius (pad with first hit; 0 if none). -> (B,M,K)."""
    d2 = jnp.sum((centers[:, :, None, :] - coords[:, None, :, :]) ** 2, axis=-1)
    within = d2 < radius * radius
    N = coords.shape[1]
    order = jnp.arange(N, dtype=jnp.int32)
    key = jnp.where(within, order, order + N)
    idx_sorted = jnp.argsort(key, axis=-1)[..., :K].astype(jnp.int32)
    cnt = jnp.sum(within, axis=-1, keepdims=True)
    first = idx_sorted[..., :1]
    pos = jnp.arange(K, dtype=jnp.int32)[None, None, :]
    idx = jnp.where(pos < jnp.maximum(cnt, 1), idx_sorted, first)
    idx = jnp.where(cnt > 0, idx, 0)
    return idx


def group_points(values, idx):
    """values (B,N,C), idx (B,M,K) -> (B,M,K,C)."""
    return jax.vmap(lambda vb, ib: vb[ib])(values, idx)


def three_nn_interpolate(points_coords, centers_coords, centers_features):
    """Inverse-squared-distance 3-NN feature interpolation (PointNetFPModule).
    points (B,Np,3), centers (B,Mc,3), feats (B,Mc,C) -> (B,Np,C)."""
    d2 = jnp.sum((points_coords[:, :, None, :] -
                  centers_coords[:, None, :, :]) ** 2, axis=-1)   # (B,Np,Mc)
    neg_d, idx = lax.top_k(-d2, 3)
    w = 1.0 / (-neg_d + 1e-8)
    w = w / jnp.sum(w, axis=-1, keepdims=True)
    g = jax.vmap(lambda fb, ib: fb[ib])(centers_features, idx)    # (B,Np,3,C)
    return jnp.sum(g * w[..., None], axis=2)


# --------------------------------------------------------------------------
# Module-level forwards
# --------------------------------------------------------------------------
def pointnet_sa_module(features, coords, cfg):
    """PointNetSAModule: FPS -> ball query -> grouped SharedMLP -> max over K.
    features (B,N,Cin), coords (B,N,3) -> (B,M,Cout), (B,M,3)."""
    centers = furthest_point_sample(coords, cfg["num_centers"])
    idx = ball_query(centers, coords, cfg["radius"], cfg["num_neighbors"])
    grouped = group_points(features, idx)                        # (B,M,K,Cin)
    if cfg["include_coords"]:
        gc = group_points(coords, idx) - centers[:, :, None, :]
        grouped = jnp.concatenate([gc, grouped], axis=-1)
    B, M, K, C = grouped.shape
    x = grouped.reshape(B * M * K, C)                            # flatten at DMA boundary
    out = grouped_mlp_max(x, B * M, K, cfg["layers"])            # (B*M, Cout)
    return out.reshape(B, M, -1), centers


def pointnet2_forward(params, inputs, time_emb):
    B, _, N = inputs.shape
    coords = jnp.transpose(inputs, (0, 2, 1))        # -> points-major (B, N, 3)
    features = coords

    # time_embed: Linear -> LeakyReLU(0.1) -> Linear (single fused kernel)
    te = pointwise_mlp(time_emb, params["time_embed"])           # (B, T)
    T = te.shape[-1]

    coords_list, in_features_list = [], []
    for idx, sa_cfg in enumerate(params["sa"]):
        in_features_list.append(features)
        coords_list.append(coords)
        if idx > 0:
            te_exp = jnp.broadcast_to(te[:, None, :], (B, features.shape[1], T))
            features = jnp.concatenate([features, te_exp], axis=-1)
        features, coords = pointnet_sa_module(features, coords, sa_cfg)

    features = attention(features, params["attn"])               # (B, M, C)

    for fp_idx, fp_cfg in enumerate(params["fp"]):
        te_exp = jnp.broadcast_to(te[:, None, :], (B, features.shape[1], T))
        features = jnp.concatenate([features, te_exp], axis=-1)
        points_coords = coords_list[-1 - fp_idx]
        skip = in_features_list[-1 - fp_idx]
        interp = three_nn_interpolate(points_coords, coords, features)
        feats = jnp.concatenate([interp, skip], axis=-1)         # (B, Np, Ctot)
        Np, Cc = feats.shape[1], feats.shape[2]
        flat = pointwise_mlp(feats.reshape(B * Np, Cc), fp_cfg["layers"])
        features = flat.reshape(B, Np, -1)
        coords = points_coords

    # classifier: SharedMLP(32->128) + Dropout(0.5)[eval identity] + Conv1d(128->3)
    # fused into ONE kernel; head output is zero-padded to 128 lanes inside the
    # kernel for lane-dense stores, sliced back to 3 channels here.
    flat = features.reshape(B * N, -1)
    out = pointwise_mlp(flat, params["classifier"])              # (B*N, 128)
    out = out[:, :params["num_classes"]].reshape(B, N, params["num_classes"])
    return jnp.transpose(out, (0, 2, 1))                         # (B, 3, N)


# --------------------------------------------------------------------------
# Deterministic parameter initialization (BN folded into weights)
# --------------------------------------------------------------------------
def _conv_bn_layer(key, cin, cout, act="relu"):
    k1, k2, k3, k4 = jax.random.split(key, 4)
    w = jax.random.normal(k1, (cin, cout), jnp.float32) / jnp.sqrt(cin)
    b_conv = 0.01 * jax.random.normal(k2, (cout,), jnp.float32)
    gamma = 1.0 + 0.1 * jax.random.normal(k3, (cout,), jnp.float32)
    beta = 0.1 * jax.random.normal(k4, (cout,), jnp.float32)
    eps = 1e-5
    # BatchNorm folded in eval mode with fresh running stats (mean=0, var=1):
    # fold the scale into the weight columns so the kernel is dot + bias + act.
    scale = gamma / jnp.sqrt(1.0 + eps)
    w_folded = w * scale[None, :]
    bias = scale * b_conv + beta
    return {"w": w_folded, "bias": bias.reshape(1, cout), "act": act}


def _linear_layer(key, cin, cout, act="none", pad_to=None):
    k1, k2 = jax.random.split(key)
    w = jax.random.normal(k1, (cin, cout), jnp.float32) / jnp.sqrt(cin)
    b = 0.01 * jax.random.normal(k2, (cout,), jnp.float32)
    if pad_to is not None and pad_to > cout:
        w = jnp.pad(w, ((0, 0), (0, pad_to - cout)))
        b = jnp.pad(b, (0, pad_to - cout))
        cout = pad_to
    return {"w": w, "bias": b.reshape(1, cout), "act": act}


def _attention_params(key, C):
    ks = jax.random.split(key, 4)
    w_qkv = jax.random.normal(ks[0], (C, 3 * C), jnp.float32) / jnp.sqrt(C)
    b_qkv = 0.01 * jax.random.normal(ks[1], (1, 3 * C), jnp.float32)
    wo = jax.random.normal(ks[2], (C, C), jnp.float32) / jnp.sqrt(C)
    bo = 0.01 * jax.random.normal(ks[3], (1, C), jnp.float32)
    return dict(w_qkv=w_qkv, b_qkv=b_qkv, wo=wo, bo=bo)


def init_params(key, time_emb_dim):
    T = time_emb_dim
    ks = list(jax.random.split(key, 16))
    params = {}
    params["time_embed"] = [_linear_layer(ks[0], T, T, act="leaky"),
                            _linear_layer(ks[1], T, T, act="none")]

    # sa_blocks = [(None, (32, 1.0, 8, (32,))), (None, (16, 2.0, 8, (64,)))]
    # TODO(synk): the reference construction adds time_channels to in_channels of
    # the first conv-less SA block, but PointNet2.forward only concatenates the
    # time embedding for idx > 0; we follow the forward (SA0 MLP in_channels=3).
    params["sa"] = [
        dict(num_centers=32, radius=1.0, num_neighbors=8, include_coords=False,
             layers=[_conv_bn_layer(ks[2], 3, 32)]),
        dict(num_centers=16, radius=2.0, num_neighbors=8, include_coords=True,
             layers=[_conv_bn_layer(ks[3], 32 + T + 3, 64)]),
    ]
    channels_sa_features = 64

    params["attn"] = _attention_params(ks[4], channels_sa_features)

    # fp_blocks = [((64,), None), ((32, 32), None)], sa_in_channels = [3, 32]
    params["fp"] = [
        dict(layers=[_conv_bn_layer(ks[5], 64 + 32 + T, 64)]),
        dict(layers=[_conv_bn_layer(ks[6], 64 + 3 + T, 32),
                     _conv_bn_layer(ks[7], 32, 32)]),
    ]

    # classifier fused: SharedMLP(32->128) + Conv1d(128->3) (head padded to 128
    # output lanes for lane-dense stores; sliced back to 3 outside the kernel).
    params["classifier"] = [_conv_bn_layer(ks[8], 32, 128),
                            _linear_layer(ks[9], 128, 3, act="none", pad_to=128)]
    params["num_classes"] = 3
    return params


# --------------------------------------------------------------------------
if __name__ == "__main__":
    B, N, T = 2, 64, 16
    root = jax.random.PRNGKey(0)
    k_in, k_t, k_p = jax.random.split(root, 3)
    inputs = jax.random.normal(k_in, (B, 3, N), jnp.float32)     # (B, 3, N) point cloud
    time_emb = jax.random.normal(k_t, (B, T), jnp.float32)       # (B, time_emb_dim)
    params = init_params(k_p, T)

    out = pointnet2_forward(params, inputs, time_emb)
    out = jax.block_until_ready(out)
    assert out.shape == (B, 3, N) and out.dtype == jnp.float32
    assert bool(jnp.all(jnp.isfinite(out)))
    print("KERNEL_OK")
</pallas_src>

<mosaic_0001>
module attributes {stable_mosaic.version = 11 : i64} {
  func.func @kernel(%arg0: i32, %arg1: memref<2x16xf32, #tpu.memory_space<vmem>>, %arg2: memref<16x16xf32, #tpu.memory_space<vmem>>, %arg3: memref<1x16xf32, #tpu.memory_space<vmem>>, %arg4: memref<16x16xf32, #tpu.memory_space<vmem>>, %arg5: memref<1x16xf32, #tpu.memory_space<vmem>>, %arg6: memref<2x16xf32, #tpu.memory_space<vmem>>) attributes {dimension_semantics = [#tpu.dimension_semantics<parallel>], iteration_bounds = array<i64: 1>, scalar_prefetch = 0 : i64, scratch_operands = 0 : i64, tpu.core_type = #tpu.core_type<tc>, window_params = [{transform_indices = @transform_0, window_bounds = array<i64: 2, 16>}, {pipeline_mode = #tpu.pipeline_mode<synchronous>, transform_indices = @transform_1, window_bounds = array<i64: 16, 16>}, {pipeline_mode = #tpu.pipeline_mode<synchronous>, transform_indices = @transform_2, window_bounds = array<i64: 1, 16>}, {pipeline_mode = #tpu.pipeline_mode<synchronous>, transform_indices = @transform_3, window_bounds = array<i64: 16, 16>}, {pipeline_mode = #tpu.pipeline_mode<synchronous>, transform_indices = @transform_4, window_bounds = array<i64: 1, 16>}, {transform_indices = @transform_5, window_bounds = array<i64: 2, 16>}]} {
    %c0 = arith.constant 0 : index
    %c0_0 = arith.constant 0 : index
    %0 = vector.load %arg1[%c0, %c0_0] : memref<2x16xf32, #tpu.memory_space<vmem>>, vector<2x16xf32>
    %c0_1 = arith.constant 0 : index
    %c0_2 = arith.constant 0 : index
    %1 = vector.load %arg2[%c0_1, %c0_2] : memref<16x16xf32, #tpu.memory_space<vmem>>, vector<16x16xf32>
    %c0_3 = arith.constant 0 : index
    %c0_4 = arith.constant 0 : index
    %2 = vector.load %arg3[%c0_3, %c0_4] : memref<1x16xf32, #tpu.memory_space<vmem>>, vector<1x16xf32>
    %cst = arith.constant dense<0.000000e+00> : vector<2x16xf32>
    %3 = tpu.matmul %0, %1, %cst {dimension_numbers = #tpu.dot_dimension_numbers<[1], [0], [0], [1], [0, 0, 1, 1], [], []>} : vector<2x16xf32>, vector<16x16xf32>, vector<2x16xf32> -> vector<2x16xf32>
    %4 = vector.broadcast %2 : vector<1x16xf32> to vector<2x16xf32>
    %5 = arith.addf %3, %4 : vector<2x16xf32>
    %cst_5 = arith.constant 0.000000e+00 : f32
    %6 = vector.broadcast %cst_5 : f32 to vector<2x16xf32>
    %7 = arith.cmpf ogt, %5, %6 : vector<2x16xf32>
    %cst_6 = arith.constant 1.000000e-01 : f32
    %8 = vector.broadcast %cst_6 : f32 to vector<2x16xf32>
    %9 = arith.mulf %8, %5 : vector<2x16xf32>
    %10 = arith.select %7, %5, %9 : vector<2x16xi1>, vector<2x16xf32>
    %c0_7 = arith.constant 0 : index
    %c0_8 = arith.constant 0 : index
    %11 = vector.load %arg4[%c0_7, %c0_8] : memref<16x16xf32, #tpu.memory_space<vmem>>, vector<16x16xf32>
    %c0_9 = arith.constant 0 : index
    %c0_10 = arith.constant 0 : index
    %12 = vector.load %arg5[%c0_9, %c0_10] : memref<1x16xf32, #tpu.memory_space<vmem>>, vector<1x16xf32>
    %cst_11 = arith.constant dense<0.000000e+00> : vector<2x16xf32>
    %13 = tpu.matmul %10, %11, %cst_11 {dimension_numbers = #tpu.dot_dimension_numbers<[1], [0], [0], [1], [0, 0, 1, 1], [], []>} : vector<2x16xf32>, vector<16x16xf32>, vector<2x16xf32> -> vector<2x16xf32>
    %14 = vector.broadcast %12 : vector<1x16xf32> to vector<2x16xf32>
    %15 = arith.addf %13, %14 : vector<2x16xf32>
    %c0_12 = arith.constant 0 : index
    %c0_13 = arith.constant 0 : index
    %16 = vector.load %arg6[%c0_12, %c0_13] : memref<2x16xf32, #tpu.memory_space<vmem>>, vector<2x16xf32>
    tpu.vector_store %arg6[%c0_12, %c0_13], %15 {strides = array<i32>} : memref<2x16xf32, #tpu.memory_space<vmem>>, vector<2x16xf32>,
    return
  }
  func.func @transform_0(%arg0: i32) -> (i32, i32) {
    %c0_i32 = arith.constant 0 : i32
    %c0_i32_0 = arith.constant 0 : i32
    return %arg0, %c0_i32 : i32, i32
  }
  func.func @transform_1(%arg0: i32) -> (i32, i32) {
    %c0_i32 = arith.constant 0 : i32
    %c0_i32_0 = arith.constant 0 : i32
    %c0_i32_1 = arith.constant 0 : i32
    return %c0_i32, %c0_i32_0 : i32, i32
  }
  func.func @transform_2(%arg0: i32) -> (i32, i32) {
    %c0_i32 = arith.constant 0 : i32
    %c0_i32_0 = arith.constant 0 : i32
    %c0_i32_1 = arith.constant 0 : i32
    return %c0_i32, %c0_i32_0 : i32, i32
  }
  func.func @transform_3(%arg0: i32) -> (i32, i32) {
    %c0_i32 = arith.constant 0 : i32
    %c0_i32_0 = arith.constant 0 : i32
    %c0_i32_1 = arith.constant 0 : i32
    return %c0_i32, %c0_i32_0 : i32, i32
  }
  func.func @transform_4(%arg0: i32) -> (i32, i32) {
    %c0_i32 = arith.constant 0 : i32
    %c0_i32_0 = arith.constant 0 : i32
    %c0_i32_1 = arith.constant 0 : i32
    return %c0_i32, %c0_i32_0 : i32, i32
  }
  func.func @transform_5(%arg0: i32) -> (i32, i32) {
    %c0_i32 = arith.constant 0 : i32
    %c0_i32_0 = arith.constant 0 : i32
    return %arg0, %c0_i32 : i32, i32
  }
}

</mosaic_0001>

<llo_original>
// kernel: tpu_custom_call.1
$region0: #{tpu_custom_call.1}
  #allocation0 [shape = 'u32[]', space=smem, size = 0x4, offset = 0x4, fixed_abs, tag = 'smem constant byte address 0x4 - core index']
  #allocation1 [shape = 'u32[144,128]{1,0:T(1,128)}', space=vmem, size = 0x12000, scoped, tag = 'internal scratch']
  %s0 = inlined_call_operand.hbm [shape: f32[2,16], index: 0, kind: input, shape index: {}]
  %s1 = inlined_call_operand.hbm [shape: f32[16,16], index: 1, kind: input, shape index: {}]
  %s2 = inlined_call_operand.vmem [shape: f32[1,16], index: 2, kind: input, shape index: {}]
  %s3 = inlined_call_operand.hbm [shape: f32[16,16], index: 3, kind: input, shape index: {}]
  %s4 = inlined_call_operand.vmem [shape: f32[1,16], index: 4, kind: input, shape index: {}]
  %s5 = inlined_call_operand.hbm [shape: f32[2,16], index: 5, kind: output, shape index: {}]
  %s6 = sld [smem:[#allocation0]]
  $region42: #{tpu_custom_call.1} parent=0
    _
  %s8 = ssub.s32 1, %s6
  %s9 = scalar_select 0, %s8, %s6
  $region1: #{tpu_custom_call.1} parent=0
    #allocation2 [shape = 'u8[1024]{0}', space=vmem, size = 0x400, scoped, tag = 'input window, operand 0, single buffered']
    #allocation3 [shape = 's32[1]{0}', space=sflag, size = 0x4, scoped, tag = 'scoped memory for tpu_custom_call.1']
    #allocation4 [shape = 's32[1]{0}', space=sflag, size = 0x4, scoped, tag = 'scoped memory for tpu_custom_call.1']
    #allocation5 [shape = 'u8[8192]{0}', space=vmem, size = 0x2000, scoped, tag = 'input window, operand 1, single buffered']
    #allocation6 [shape = 's32[1]{0}', space=sflag, size = 0x4, scoped, tag = 'scoped memory for tpu_custom_call.1']
    #allocation7 [shape = 'u8[8192]{0}', space=vmem, size = 0x2000, scoped, tag = 'input window, operand 3, single buffered']
    #allocation8 [shape = 'u8[1024]{0}', space=vmem, size = 0x400, scoped, tag = 'output window, operand 0, single buffered']
    %10 = vsyncpa [#allocation3], 0
    %11 = vsyncpa [#allocation6], 0
    %12 = vsyncpa [#allocation4], 0
    // Predicated region
    $region2: #{tpu_custom_call.1} parent=1 // pred_check
      _
    $region3: #{tpu_custom_call.1} parent=1 // pred_check_branch
      %14 = sbr.rel (0) target = $region5
    $region4: #{tpu_custom_call.1} parent=1 // pred_region
      %s16 = ssub.s32 32, 32
      %17 = vsyncadd [#allocation3], %s16
      %s19 = sshll.u32 [#allocation2], 4
      %s20 = int_to_ptr.vmem [resolvable:$true] %s19
      %22 = dma.hbm_to_vmem [thread:$0]  %s0, 32, %s20, [#allocation3]
    $region5: #{tpu_custom_call.1} parent=1 // pred_fallthru
      _
    // Predicated region
    $region6: #{tpu_custom_call.1} parent=1 // pred_check
      _
    $region7: #{tpu_custom_call.1} parent=1 // pred_check_branch
      %24 = sbr.rel (0) target = $region9
    $region8: #{tpu_custom_call.1} parent=1 // pred_region
      %s26 = ssub.s32 256, 256
      %27 = vsyncadd [#allocation6], %s26
      %s28 = sshll.u32 [#allocation5], 4
      %s29 = int_to_ptr.vmem [resolvable:$true] %s28
      %34 = dma.hbm_to_vmem [thread:$0]  %s1, 256, %s29, [#allocation6], 128, 128, 8
    $region9: #{tpu_custom_call.1} parent=1 // pred_fallthru
      _
    // Predicated region
    $region10: #{tpu_custom_call.1} parent=1 // pred_check
      _
    $region11: #{tpu_custom_call.1} parent=1 // pred_check_branch
      %36 = sbr.rel (0) target = $region13
    $region12: #{tpu_custom_call.1} parent=1 // pred_region
      _
    $region13: #{tpu_custom_call.1} parent=1 // pred_fallthru
      _
    // Predicated region
    $region14: #{tpu_custom_call.1} parent=1 // pred_check
      _
    $region15: #{tpu_custom_call.1} parent=1 // pred_check_branch
      %38 = sbr.rel (0) target = $region17
    $region16: #{tpu_custom_call.1} parent=1 // pred_region
      %s40 = ssub.s32 256, 256
      %41 = vsyncadd [#allocation6], %s40
      %s42 = sshll.u32 [#allocation7], 4
      %s43 = int_to_ptr.vmem [resolvable:$true] %s42
      %48 = dma.hbm_to_vmem [thread:$0]  %s3, 256, %s43, [#allocation6], 128, 128, 8
    $region17: #{tpu_custom_call.1} parent=1 // pred_fallthru
      _
    // Predicated region
    $region18: #{tpu_custom_call.1} parent=1 // pred_check
      _
    $region19: #{tpu_custom_call.1} parent=1 // pred_check_branch
      %50 = sbr.rel (0) target = $region21
    $region20: #{tpu_custom_call.1} parent=1 // pred_region
      _
    $region21: #{tpu_custom_call.1} parent=1 // pred_fallthru
      _
    // Predicated region
    $region22: #{tpu_custom_call.1} parent=1 // pred_check
      _
    $region23: #{tpu_custom_call.1} parent=1 // pred_check_branch
      %52 = sbr.rel (0) target = $region25
    $region24: #{tpu_custom_call.1} parent=1 // pred_region
      %53 = dma.done [#allocation3], 32
    $region25: #{tpu_custom_call.1} parent=1 // pred_fallthru
      _
    // Predicated region
    $region26: #{tpu_custom_call.1} parent=1 // pred_check
      _
    $region27: #{tpu_custom_call.1} parent=1 // pred_check_branch
      %55 = sbr.rel (0) target = $region29
    $region28: #{tpu_custom_call.1} parent=1 // pred_region
      %56 = dma.done [#allocation6], 256
    $region29: #{tpu_custom_call.1} parent=1 // pred_fallthru
      _
    // Predicated region
    $region30: #{tpu_custom_call.1} parent=1 // pred_check
      _
    $region31: #{tpu_custom_call.1} parent=1 // pred_check_branch
      %58 = sbr.rel (0) target = $region33
    $region32: #{tpu_custom_call.1} parent=1 // pred_region
      %59 = dma.done [#allocation6], 256
    $region33: #{tpu_custom_call.1} parent=1 // pred_fallthru
      _
    %v60 = vld [vmem:[#allocation2] sm:$0x3]
    %v61 = vld [vmem:[#allocation5] sm:$0xff]
    %v62 = vld [vmem:[#allocation5 + $0x8] sm:$0xff]
    %v63 = vld [vmem:[%s2] sm:$0x1]
    %v65 = vlaneseq
    %v66 = vshrl.u32 %v65, 7
    %v67 = vsub.s32 0, %v66
    %v68 = vrot.slane %v63, %v67
    %vm70 = vcmask 130048
    %v72 = vsel %vm70, %v60, 0
    %74 = vmatprep.subr.mxu0 0.0
    %75 = vmatpush1.msra.mxu0 0.0
    %76 = vmatprep.subr.mxu0 0.0
    %77 = vmatpush1.msra.mxu0 0.0
    %78 = vmatprep.subr.mxu0 0.0
    %79 = vmatpush1.msra.mxu0 0.0
    %80 = vmatprep.subr.mxu0 0.0
    %81 = vmatpush1.msra.mxu0 0.0
    %82 = vmatprep.subr.mxu0 0.0
    %83 = vmatpush1.msra.mxu0 0.0
    %84 = vmatprep.subr.mxu0 0.0
    %85 = vmatpush1.msra.mxu0 0.0
    %86 = vmatprep.subr.mxu0 0.0
    %87 = vmatpush1.msra.mxu0 0.0
    %88 = vmatprep.subr.mxu0 0.0
    %89 = vmatpush1.msra.mxu0 0.0
    %90 = vmatprep.subr.mxu0 0.0
    %91 = vmatpush1.msra.mxu0 0.0
    %92 = vmatprep.subr.mxu0 0.0
    %93 = vmatpush1.msra.mxu0 0.0
    %94 = vmatprep.subr.mxu0 0.0
    %95 = vmatpush1.msra.mxu0 0.0
    %96 = vmatprep.subr.mxu0 0.0
    %97 = vmatpush1.msra.mxu0 0.0
    %98 = vmatprep.subr.mxu0 0.0
    %99 = vmatpush1.msra.mxu0 0.0
    %100 = vmatprep.subr.mxu0 0.0
    %101 = vmatpush1.msra.mxu0 0.0
    %102 = vmatprep.subr.mxu0 0.0
    %103 = vmatpush1.msra.mxu0 %v62
    %104 = vmatprep.subr.mxu0 0.0
    %105 = vmatpush1.msra.mxu0 %v61
    %106 = vmatprep.subr.mxu0 0.0
    %107 = vmatpush2.msra.mxu0 0.0
    %108 = vmatprep.subr.mxu0 0.0
    %109 = vmatpush2.msra.mxu0 0.0
    %110 = vmatprep.subr.mxu0 0.0
    %111 = vmatpush2.msra.mxu0 0.0
    %112 = vmatprep.subr.mxu0 0.0
    %113 = vmatpush2.msra.mxu0 0.0
    %114 = vmatprep.subr.mxu0 0.0
    %115 = vmatpush2.msra.mxu0 0.0
    %116 = vmatprep.subr.mxu0 0.0
    %117 = vmatpush2.msra.mxu0 0.0
    %118 = vmatprep.subr.mxu0 0.0
    %119 = vmatpush2.msra.mxu0 0.0
    %120 = vmatprep.subr.mxu0 0.0
    %121 = vmatpush2.msra.mxu0 0.0
    %122 = vmatprep.subr.mxu0 0.0
    %123 = vmatpush2.msra.mxu0 0.0
    %124 = vmatprep.subr.mxu0 0.0
    %125 = vmatpush2.msra.mxu0 0.0
    %126 = vmatprep.subr.mxu0 0.0
    %127 = vmatpush2.msra.mxu0 0.0
    %128 = vmatprep.subr.mxu0 0.0
    %129 = vmatpush2.msra.mxu0 0.0
    %130 = vmatprep.subr.mxu0 0.0
    %131 = vmatpush2.msra.mxu0 0.0
    %132 = vmatprep.subr.mxu0 0.0
    %133 = vmatpush2.msra.mxu0 0.0
    %134 = vmatprep.subr.mxu0 0.0
    %135 = vmatpush2.msra.mxu0 0.0
    %136 = vmatprep.subr.mxu0 0.0
    %137 = vmatpush2.msra.mxu0 0.0
    %138 = vmatprep.mubr.f32.mxu0 0.0
    %139 = vmatmul.mubr.f32.gmra.mxu0 %v72
    %v140 = vpop.f32.mrf.mxu0
    %v141 = vadd.f32 %v68, %v140
    %v142 = vpop.f32.mrf.mxu0
    %143 = vdwg.mxu0
    %vm144 = vcmp.gt.f32.partialorder %v141, 0.0
    %v145 = vmul.f32 %v141, 0.1
    %v146 = vsel %vm144, %v141, %v145
    %v147 = vld [vmem:[#allocation7] sm:$0xff]
    %v148 = vld [vmem:[#allocation7 + $0x8] sm:$0xff]
    %v149 = vld [vmem:[%s4] sm:$0x1]
    %v151 = vlaneseq
    %v152 = vshrl.u32 %v151, 7
    %v153 = vsub.s32 0, %v152
    %v154 = vrot.slane %v149, %v153
    %v157 = vsel %vm70, %v146, 0
    %159 = vmatprep.subr.mxu0 0.0
    %160 = vmatpush1.msra.mxu0 0.0
    %161 = vmatprep.subr.mxu0 0.0
    %162 = vmatpush1.msra.mxu0 0.0
    %163 = vmatprep.subr.mxu0 0.0
    %164 = vmatpush1.msra.mxu0 0.0
    %165 = vmatprep.subr.mxu0 0.0
    %166 = vmatpush1.msra.mxu0 0.0
    %167 = vmatprep.subr.mxu0 0.0
    %168 = vmatpush1.msra.mxu0 0.0
    %169 = vmatprep.subr.mxu0 0.0
    %170 = vmatpush1.msra.mxu0 0.0
    %171 = vmatprep.subr.mxu0 0.0
    %172 = vmatpush1.msra.mxu0 0.0
    %173 = vmatprep.subr.mxu0 0.0
    %174 = vmatpush1.msra.mxu0 0.0
    %175 = vmatprep.subr.mxu0 0.0
    %176 = vmatpush1.msra.mxu0 0.0
    %177 = vmatprep.subr.mxu0 0.0
    %178 = vmatpush1.msra.mxu0 0.0
    %179 = vmatprep.subr.mxu0 0.0
    %180 = vmatpush1.msra.mxu0 0.0
    %181 = vmatprep.subr.mxu0 0.0
    %182 = vmatpush1.msra.mxu0 0.0
    %183 = vmatprep.subr.mxu0 0.0
    %184 = vmatpush1.msra.mxu0 0.0
    %185 = vmatprep.subr.mxu0 0.0
    %186 = vmatpush1.msra.mxu0 0.0
    %187 = vmatprep.subr.mxu0 0.0
    %188 = vmatpush1.msra.mxu0 %v148
    %189 = vmatprep.subr.mxu0 0.0
    %190 = vmatpush1.msra.mxu0 %v147
    %191 = vmatprep.subr.mxu0 0.0
    %192 = vmatpush2.msra.mxu0 0.0
    %193 = vmatprep.subr.mxu0 0.0
    %194 = vmatpush2.msra.mxu0 0.0
    %195 = vmatprep.subr.mxu0 0.0
    %196 = vmatpush2.msra.mxu0 0.0
    %197 = vmatprep.subr.mxu0 0.0
    %198 = vmatpush2.msra.mxu0 0.0
    %199 = vmatprep.subr.mxu0 0.0
    %200 = vmatpush2.msra.mxu0 0.0
    %201 = vmatprep.subr.mxu0 0.0
    %202 = vmatpush2.msra.mxu0 0.0
    %203 = vmatprep.subr.mxu0 0.0
    %204 = vmatpush2.msra.mxu0 0.0
    %205 = vmatprep.subr.mxu0 0.0
    %206 = vmatpush2.msra.mxu0 0.0
    %207 = vmatprep.subr.mxu0 0.0
    %208 = vmatpush2.msra.mxu0 0.0
    %209 = vmatprep.subr.mxu0 0.0
    %210 = vmatpush2.msra.mxu0 0.0
    %211 = vmatprep.subr.mxu0 0.0
    %212 = vmatpush2.msra.mxu0 0.0
    %213 = vmatprep.subr.mxu0 0.0
    %214 = vmatpush2.msra.mxu0 0.0
    %215 = vmatprep.subr.mxu0 0.0
    %216 = vmatpush2.msra.mxu0 0.0
    %217 = vmatprep.subr.mxu0 0.0
    %218 = vmatpush2.msra.mxu0 0.0
    %219 = vmatprep.subr.mxu0 0.0
    %220 = vmatpush2.msra.mxu0 0.0
    %221 = vmatprep.subr.mxu0 0.0
    %222 = vmatpush2.msra.mxu0 0.0
    %223 = vmatprep.mubr.f32.mxu0 0.0
    %224 = vmatmul.mubr.f32.gmra.mxu0 %v157
    %v225 = vpop.f32.mrf.mxu0
    %v226 = vadd.f32 %v154, %v225
    %v227 = vpop.f32.mrf.mxu0
    %228 = vdwg.mxu0
    %vm229 = vcmask 123904
    %230 = vst.msk [vmem:[#allocation8] sm:$0x3] %vm229, %v226
    // Predicated region
    $region34: #{tpu_custom_call.1} parent=1 // pred_check
      _
    $region35: #{tpu_custom_call.1} parent=1 // pred_check_branch
      %232 = sbr.rel (0) target = $region37
    $region36: #{tpu_custom_call.1} parent=1 // pred_region
      %s234 = ssub.s32 32, 32
      %235 = vsyncadd [#allocation4], %s234
      %s237 = sshll.u32 [#allocation8], 4
      %s238 = int_to_ptr.vmem [resolvable:$true] %s237
      %240 = dma.vmem_to_hbm [thread:$0]  %s238, 32, %s5, [#allocation4]
    $region37: #{tpu_custom_call.1} parent=1 // pred_fallthru
      _
    // Predicated region
    $region38: #{tpu_custom_call.1} parent=1 // pred_check
      _
    $region39: #{tpu_custom_call.1} parent=1 // pred_check_branch
      %242 = sbr.rel (0) target = $region41
    $region40: #{tpu_custom_call.1} parent=1 // pred_region
      %243 = dma.done [#allocation4], 32
    $region41: #{tpu_custom_call.1} parent=1 // pred_fallthru
      _
    %244 = vsyncpa [#allocation3], 1
    %245 = vsyncpa [#allocation6], 1
    %246 = vsyncpa [#allocation4], 1

</llo_original>
